<compile_context>
chip_gen: v6e
topology: v6e:2x2x1
jax: 0.10.0
libtpu: 0.0.40
codegen_flags: <defaults>
</compile_context>

<pallas_src>
import jax
import jax.numpy as jnp
from jax import lax
from jax.experimental import pallas as pl
from jax.experimental.pallas import tpu as pltpu


def e2e_kernel(a_ref, at_ref, w1_ref, w2_ref, bias_ref, out_ref):
    # a_ref:   (C*d, d)      A[n] with (c, h) flattened; j on the lane axis
    # at_ref:  (C*d, d)      A[n].swapaxes(-2,-1) with (c, w) flattened; i on the lane axis
    # w1_ref:  (tile_o, C*d) flattened (d,1)-conv weight tile
    # w2_ref:  (tile_o, C*d) flattened (1,d)-conv weight tile
    # bias_ref:(tile_o, 1)   b1 + b2
    # out_ref: (tile_o, d, d)
    a_oj = jnp.dot(w1_ref[...], a_ref[...],
                   preferred_element_type=jnp.float32)            # (tile_o, d), indexed by j
    b_oi = jnp.dot(w2_ref[...], at_ref[...],
                   preferred_element_type=jnp.float32)            # (tile_o, d), indexed by i
    a_oj = a_oj + bias_ref[...]                                   # fold bias once per (o, j)
    out = a_oj[:, None, :] + b_oi[:, :, None]                     # out[o,i,j] = a[o,j] + b[o,i]
    # TODO(synk): the downstream LeakyReLU of the surrounding BrainCNN model could be fused
    # here (single jnp.where on the tile) to save a full extra pass over (N, O, d, d).
    out_ref[...] = out.astype(out_ref.dtype)


def _pick_tile_o(O, target=16):
    """Largest O-tile <= target that divides O and satisfies the (8,128) sublane rule."""
    if O <= target:
        return O
    for t in range(target, 7, -1):
        if O % t == 0 and t % 8 == 0:
            return t
    return O


def e2e_forward(A, W1, W2, b1, b2, out_dtype=jnp.float32):
    """A: (N, C, d, d); W1: (O, C, d, 1); W2: (O, C, 1, d); b1, b2: (O,)."""
    N, C, d, _ = A.shape
    O = W1.shape[0]
    tile_o = _pick_tile_o(O)
    n_o_tiles = O // tile_o

    A = A.astype(jnp.float32)
    a_flat = A.reshape(N, C * d, d)                               # contract (c,h); j last
    at_flat = jnp.swapaxes(A, 2, 3).reshape(N, C * d, d)          # contract (c,w); i last
    w1_flat = W1.reshape(O, C * d).astype(jnp.float32)
    w2_flat = W2.reshape(O, C * d).astype(jnp.float32)
    bias = (b1 + b2).reshape(O, 1).astype(jnp.float32)

    # Per-step block bytes (f32), double-buffered by the pipeline.
    blk_bytes = 4 * (2 * C * d * d            # A + A^T blocks
                     + 2 * tile_o * C * d     # W1 + W2 tiles
                     + tile_o                 # bias
                     + tile_o * d * d)        # output tile
    vmem_limit = int(min(max(2 * blk_bytes + (2 << 20), 32 << 20), 56 << 20))

    out_bytes = N * O * d * d * jnp.dtype(out_dtype).itemsize
    in_bytes = 4 * (2 * N * C * d * d + 2 * O * C * d + 2 * O)
    cost = pl.CostEstimate(
        flops=4 * N * O * C * d * d + 2 * N * O * d * d,
        transcendentals=0,
        bytes_accessed=out_bytes + in_bytes,
    )

    return pl.pallas_call(
        e2e_kernel,
        out_shape=jax.ShapeDtypeStruct((N, O, d, d), out_dtype),
        grid_spec=pltpu.PrefetchScalarGridSpec(
            num_scalar_prefetch=0,
            grid=(N, n_o_tiles),                                   # O axis innermost
            in_specs=[
                pl.BlockSpec((None, C * d, d), lambda n, o: (n, 0, 0)),   # A   (resident over o)
                pl.BlockSpec((None, C * d, d), lambda n, o: (n, 0, 0)),   # A^T (resident over o)
                pl.BlockSpec((tile_o, C * d), lambda n, o: (o, 0)),       # W1 tile
                pl.BlockSpec((tile_o, C * d), lambda n, o: (o, 0)),       # W2 tile
                pl.BlockSpec((tile_o, 1), lambda n, o: (o, 0)),           # bias tile
            ],
            out_specs=pl.BlockSpec((None, tile_o, d, d), lambda n, o: (n, o, 0, 0)),
        ),
        compiler_params=pltpu.CompilerParams(
            dimension_semantics=("parallel", "parallel"),
            vmem_limit_bytes=vmem_limit,
        ),
        cost_estimate=cost,
    )(a_flat, at_flat, w1_flat, w2_flat, bias)


def e2e_reference(A, W1, W2, b1, b2):
    """Pure-JAX reference mirroring the PyTorch forward."""
    dn = ("NCHW", "OIHW", "NCHW")
    a = lax.conv_general_dilated(A, W1, (1, 1), "VALID", dimension_numbers=dn)
    a = a + b1[None, :, None, None]                               # (N, O, 1, d)
    b = lax.conv_general_dilated(A, W2, (1, 1), "VALID", dimension_numbers=dn)
    b = b + b2[None, :, None, None]                               # (N, O, d, 1)
    d = A.shape[2]
    concat1 = jnp.concatenate([a] * d, axis=2)
    concat2 = jnp.concatenate([b] * d, axis=3)
    return concat1 + concat2


if __name__ == "__main__":
    # Small, deterministic shapes consistent with the module:
    # batch=2, in_channel=2, out_channel=4, spatial d=16.
    # TODO(synk): the original forward hardcodes a 200x200 view; BrainCNN uses d==200,
    # here d is kept general (d==spatial) so a small test shape is valid.
    N, C, O, d = 2, 2, 4, 16

    key = jax.random.PRNGKey(0)
    k_a, k_w1, k_w2, k_b1, k_b2 = jax.random.split(key, 5)

    A = jax.random.normal(k_a, (N, C, d, d), dtype=jnp.float32)
    W1 = 0.1 * jax.random.normal(k_w1, (O, C, d, 1), dtype=jnp.float32)   # conv1xd weight
    W2 = 0.1 * jax.random.normal(k_w2, (O, C, 1, d), dtype=jnp.float32)   # convdx1 weight
    b1 = 0.1 * jax.random.normal(k_b1, (O,), dtype=jnp.float32)
    b2 = 0.1 * jax.random.normal(k_b2, (O,), dtype=jnp.float32)

    out = jax.block_until_ready(e2e_forward(A, W1, W2, b1, b2))
    ref = jax.block_until_ready(e2e_reference(A, W1, W2, b1, b2))

    assert out.shape == (N, O, d, d), out.shape
    assert jnp.allclose(out, ref, rtol=1e-5, atol=1e-5), float(jnp.max(jnp.abs(out - ref)))
    print("KERNEL_OK")
</pallas_src>

<mosaic_0001>
module attributes {stable_mosaic.version = 11 : i64} {
  func.func @e2e_kernel(%arg0: i32, %arg1: i32, %arg2: memref<1x32x16xf32, #tpu.memory_space<vmem>>, %arg3: memref<1x32x16xf32, #tpu.memory_space<vmem>>, %arg4: memref<4x32xf32, #tpu.memory_space<vmem>>, %arg5: memref<4x32xf32, #tpu.memory_space<vmem>>, %arg6: memref<4x1xf32, #tpu.memory_space<vmem>>, %arg7: memref<1x4x16x16xf32, #tpu.memory_space<vmem>>) attributes {dimension_semantics = [#tpu.dimension_semantics<parallel>, #tpu.dimension_semantics<parallel>], iteration_bounds = array<i64: 2, 1>, scalar_prefetch = 0 : i64, scratch_operands = 0 : i64, tpu.core_type = #tpu.core_type<tc>, window_params = [{transform_indices = @transform_0, window_bounds = array<i64: 1, 32, 16>}, {transform_indices = @transform_1, window_bounds = array<i64: 1, 32, 16>}, {transform_indices = @transform_2, window_bounds = array<i64: 4, 32>}, {transform_indices = @transform_3, window_bounds = array<i64: 4, 32>}, {transform_indices = @transform_4, window_bounds = array<i64: 4, 1>}, {transform_indices = @transform_5, window_bounds = array<i64: 1, 4, 16, 16>}]} {
    %c0 = arith.constant 0 : index
    %c0_0 = arith.constant 0 : index
    %0 = vector.load %arg4[%c0, %c0_0] : memref<4x32xf32, #tpu.memory_space<vmem>>, vector<4x32xf32>
    %c0_1 = arith.constant 0 : index
    %c0_2 = arith.constant 0 : index
    %c0_3 = arith.constant 0 : index
    %1 = vector.load %arg2[%c0_1, %c0_2, %c0_3] : memref<1x32x16xf32, #tpu.memory_space<vmem>>, vector<1x32x16xf32>
    %2 = vector.shape_cast %1 : vector<1x32x16xf32> to vector<32x16xf32>
    %cst = arith.constant dense<0.000000e+00> : vector<4x16xf32>
    %3 = tpu.matmul %0, %2, %cst {dimension_numbers = #tpu.dot_dimension_numbers<[1], [0], [0], [1], [0, 0, 1, 1], [], []>} : vector<4x32xf32>, vector<32x16xf32>, vector<4x16xf32> -> vector<4x16xf32>
    %c0_4 = arith.constant 0 : index
    %c0_5 = arith.constant 0 : index
    %4 = vector.load %arg5[%c0_4, %c0_5] : memref<4x32xf32, #tpu.memory_space<vmem>>, vector<4x32xf32>
    %c0_6 = arith.constant 0 : index
    %c0_7 = arith.constant 0 : index
    %c0_8 = arith.constant 0 : index
    %5 = vector.load %arg3[%c0_6, %c0_7, %c0_8] : memref<1x32x16xf32, #tpu.memory_space<vmem>>, vector<1x32x16xf32>
    %6 = vector.shape_cast %5 : vector<1x32x16xf32> to vector<32x16xf32>
    %cst_9 = arith.constant dense<0.000000e+00> : vector<4x16xf32>
    %7 = tpu.matmul %4, %6, %cst_9 {dimension_numbers = #tpu.dot_dimension_numbers<[1], [0], [0], [1], [0, 0, 1, 1], [], []>} : vector<4x32xf32>, vector<32x16xf32>, vector<4x16xf32> -> vector<4x16xf32>
    %c0_10 = arith.constant 0 : index
    %c0_11 = arith.constant 0 : index
    %8 = vector.load %arg6[%c0_10, %c0_11] : memref<4x1xf32, #tpu.memory_space<vmem>>, vector<4x1xf32>
    %9 = vector.broadcast %8 : vector<4x1xf32> to vector<4x16xf32>
    %10 = arith.addf %3, %9 : vector<4x16xf32>
    %11 = vector.shape_cast %10 : vector<4x16xf32> to vector<4x1x16xf32>
    %12 = vector.shape_cast %7 : vector<4x16xf32> to vector<4x16x1xf32>
    %13 = vector.broadcast %11 : vector<4x1x16xf32> to vector<4x16x16xf32>
    %14 = vector.broadcast %12 : vector<4x16x1xf32> to vector<4x16x16xf32>
    %15 = arith.addf %13, %14 : vector<4x16x16xf32>
    %c0_12 = arith.constant 0 : index
    %c0_13 = arith.constant 0 : index
    %c0_14 = arith.constant 0 : index
    %c0_15 = arith.constant 0 : index
    %16 = vector.load %arg7[%c0_12, %c0_13, %c0_14, %c0_15] : memref<1x4x16x16xf32, #tpu.memory_space<vmem>>, vector<1x4x16x16xf32>
    %17 = vector.shape_cast %16 : vector<1x4x16x16xf32> to vector<4x16x16xf32>
    %18 = vector.shape_cast %15 : vector<4x16x16xf32> to vector<1x4x16x16xf32>
    tpu.vector_store %arg7[%c0_12, %c0_13, %c0_14, %c0_15], %18 {strides = array<i32>} : memref<1x4x16x16xf32, #tpu.memory_space<vmem>>, vector<1x4x16x16xf32>,
    return
  }
  func.func @transform_0(%arg0: i32, %arg1: i32) -> (i32, i32, i32) {
    %c0_i32 = arith.constant 0 : i32
    %c0_i32_0 = arith.constant 0 : i32
    %c0_i32_1 = arith.constant 0 : i32
    return %arg0, %c0_i32, %c0_i32_0 : i32, i32, i32
  }
  func.func @transform_1(%arg0: i32, %arg1: i32) -> (i32, i32, i32) {
    %c0_i32 = arith.constant 0 : i32
    %c0_i32_0 = arith.constant 0 : i32
    %c0_i32_1 = arith.constant 0 : i32
    return %arg0, %c0_i32, %c0_i32_0 : i32, i32, i32
  }
  func.func @transform_2(%arg0: i32, %arg1: i32) -> (i32, i32) {
    %c0_i32 = arith.constant 0 : i32
    %c0_i32_0 = arith.constant 0 : i32
    return %arg1, %c0_i32 : i32, i32
  }
  func.func @transform_3(%arg0: i32, %arg1: i32) -> (i32, i32) {
    %c0_i32 = arith.constant 0 : i32
    %c0_i32_0 = arith.constant 0 : i32
    return %arg1, %c0_i32 : i32, i32
  }
  func.func @transform_4(%arg0: i32, %arg1: i32) -> (i32, i32) {
    %c0_i32 = arith.constant 0 : i32
    %c0_i32_0 = arith.constant 0 : i32
    return %arg1, %c0_i32 : i32, i32
  }
  func.func @transform_5(%arg0: i32, %arg1: i32) -> (i32, i32, i32, i32) {
    %c0_i32 = arith.constant 0 : i32
    %c0_i32_0 = arith.constant 0 : i32
    %c0_i32_1 = arith.constant 0 : i32
    return %arg0, %arg1, %c0_i32, %c0_i32_0 : i32, i32, i32, i32
  }
}

</mosaic_0001>

<llo_original>
// kernel: tpu_custom_call.1
$region0: #{tpu_custom_call.1}
  #allocation0 [shape = 'u32[]', space=smem, size = 0x4, offset = 0x4, fixed_abs, tag = 'smem constant byte address 0x4 - core index']
  #allocation1 [shape = 'u32[144,128]{1,0:T(1,128)}', space=vmem, size = 0x12000, scoped, tag = 'internal scratch']
  %s0 = inlined_call_operand.vmem [shape: f32[2,32,16], index: 0, kind: input, shape index: {}]
  %s1 = inlined_call_operand.vmem [shape: f32[2,32,16], index: 1, kind: input, shape index: {}]
  %s2 = inlined_call_operand.vmem [shape: f32[4,32], index: 2, kind: input, shape index: {}]
  %s3 = inlined_call_operand.vmem [shape: f32[4,32], index: 3, kind: input, shape index: {}]
  %s4 = inlined_call_operand.vmem [shape: f32[4,1], index: 4, kind: input, shape index: {}]
  %s5 = inlined_call_operand.hbm [shape: f32[2,4,16,16], index: 5, kind: output, shape index: {}]
  %s6 = sld [smem:[#allocation0]]
  $region53: #{tpu_custom_call.1} parent=0
    _
  %s8 = ssub.s32 1, %s6
  %s9 = scalar_select 0, %s8, %s6
  $region1: #{tpu_custom_call.1} parent=0
    #allocation2 [shape = 'u8[65536]{0}', space=vmem, size = 0x10000, scoped, tag = 'output window, operand 0']
    #allocation3 [shape = 's32[2]{0}', space=sflag, size = 0x8, scoped, tag = 'scoped memory for tpu_custom_call.1']
    %10 = vsyncpa [#allocation3], 0
    %s11 = scalar_lea.sflag [#allocation3], 1
    %12 = vsyncpa %s11, 0
    loop: start=0, step=1, limit=4
    $region2: #{tpu_custom_call.1} parent=1 // loop_pre_header
      _
    $region3: #{tpu_custom_call.1} parent=1 // loop_header
      %s14 = sphi 0, %s18
      %p15 = scmp.ge.s32.totalorder %s14, 4
      %s21 = sphi 0, %s33
      %s22 = sphi 0, %s29
      %s23 = sphi 0, %s21
      %s24 = sphi 0, %s22
      %s25 = sphi 0, %s23
      %s26 = sphi 0, %s24
      %s36 = sphi 0, %s38
      %s39 = sphi 0, %s36
      %s40 = sphi 0, %s39
      %s56 = sphi 0, %s40
      %s62 = sphi 0, %s64
      %s65 = sphi 0, %s62
      %s66 = sphi 0, %s65
      %s82 = sphi 0, %s66
      %s88 = sphi 0, %s90
      %s91 = sphi 0, %s88
      %s92 = sphi 0, %s91
      %s108 = sphi 0, %s92
      %s114 = sphi 0, %s116
      %s117 = sphi 0, %s114
      %s118 = sphi 0, %s117
      %s134 = sphi 0, %s118
      %s140 = sphi 0, %s142
      %s143 = sphi 0, %s140
      %s144 = sphi 0, %s143
      %s160 = sphi 0, %s144
      %s168 = sphi 0, %s170
      %s171 = sphi 0, %s168
      %s172 = sphi 0, %s171
      %s188 = sphi 0, %s172
    $region4: #{tpu_custom_call.1} parent=1 // loop_header_branch
      %17 = sbr.rel (%p15) target = $region8
    $region5: #{tpu_custom_call.1} parent=1 // loop_body
      %s19 = ssub.s32 %s14, 1
      %s20 = ssub.s32 %s14, 2
      %s27 = sadd.s32 1, %s22
      %p28 = scmp.ge.s32.totalorder %s27, 1
      %s29 = scalar_select %p28, 0, %s27
      %s30 = sadd.s32 1, %s21
      %s31 = scalar_select %p28, %s30, %s21
      %p32 = scmp.ge.s32.totalorder %s31, 2
      %s33 = scalar_select %p32, 0, %s31
      %s34 = ssub.s32 %s21, %s33
      %p35 = scmp.eq.s32.totalorder %s34, 0
      %s37 = sadd.s32 %s36, 1
      %s38 = scalar_select %p35, %s36, %s37
      %p41 = pneg %p35
      %p42 = scmp.eq.s32.totalorder %s14, 1
      %p43 = por %p41, %p42
      %p44 = scmp.ne.s32.totalorder %s36, %s39
      %p45 = scmp.eq.s32.totalorder %s14, 0
      %p46 = por %p44, %p45
      %p47 = scmp.ne.s32.totalorder %s36, %s39
      %p48 = scmp.eq.s32.totalorder %s19, 1
      %p49 = por %p47, %p48
      %p50 = scmp.ne.s32.totalorder %s39, %s40
      %p51 = scmp.eq.s32.totalorder %s19, 0
      %p52 = por %p50, %p51
      %p53 = scmp.ne.s32.totalorder %s39, %s40
      %p54 = scmp.eq.s32.totalorder %s20, 1
      %p55 = por %p53, %p54
      %p57 = scmp.ne.s32.totalorder %s40, %s56
      %p58 = scmp.eq.s32.totalorder %s20, 0
      %p59 = por %p57, %p58
      %s60 = ssub.s32 %s21, %s33
      %p61 = scmp.eq.s32.totalorder %s60, 0
      %s63 = sadd.s32 %s62, 1
      %s64 = scalar_select %p61, %s62, %s63
      %p67 = pneg %p61
      %p68 = scmp.eq.s32.totalorder %s14, 1
      %p69 = por %p67, %p68
      %p70 = scmp.ne.s32.totalorder %s62, %s65
      %p71 = scmp.eq.s32.totalorder %s14, 0
      %p72 = por %p70, %p71
      %p73 = scmp.ne.s32.totalorder %s62, %s65
      %p74 = scmp.eq.s32.totalorder %s19, 1
      %p75 = por %p73, %p74
      %p76 = scmp.ne.s32.totalorder %s65, %s66
      %p77 = scmp.eq.s32.totalorder %s19, 0
      %p78 = por %p76, %p77
      %p79 = scmp.ne.s32.totalorder %s65, %s66
      %p80 = scmp.eq.s32.totalorder %s20, 1
      %p81 = por %p79, %p80
      %p83 = scmp.ne.s32.totalorder %s66, %s82
      %p84 = scmp.eq.s32.totalorder %s20, 0
      %p85 = por %p83, %p84
      %s86 = ssub.s32 %s22, %s29
      %p87 = scmp.eq.s32.totalorder %s86, 0
      %s89 = sadd.s32 %s88, 1
      %s90 = scalar_select %p87, %s88, %s89
      %p93 = pneg %p87
      %p94 = scmp.eq.s32.totalorder %s14, 1
      %p95 = por %p93, %p94
      %p96 = scmp.ne.s32.totalorder %s88, %s91
      %p97 = scmp.eq.s32.totalorder %s14, 0
      %p98 = por %p96, %p97
      %p99 = scmp.ne.s32.totalorder %s88, %s91
      %p100 = scmp.eq.s32.totalorder %s19, 1
      %p101 = por %p99, %p100
      %p102 = scmp.ne.s32.totalorder %s91, %s92
      %p103 = scmp.eq.s32.totalorder %s19, 0
      %p104 = por %p102, %p103
      %p105 = scmp.ne.s32.totalorder %s91, %s92
      %p106 = scmp.eq.s32.totalorder %s20, 1
      %p107 = por %p105, %p106
      %p109 = scmp.ne.s32.totalorder %s92, %s108
      %p110 = scmp.eq.s32.totalorder %s20, 0
      %p111 = por %p109, %p110
      %s112 = ssub.s32 %s22, %s29
      %p113 = scmp.eq.s32.totalorder %s112, 0
      %s115 = sadd.s32 %s114, 1
      %s116 = scalar_select %p113, %s114, %s115
      %p119 = pneg %p113
      %p120 = scmp.eq.s32.totalorder %s14, 1
      %p121 = por %p119, %p120
      %p122 = scmp.ne.s32.totalorder %s114, %s117
      %p123 = scmp.eq.s32.totalorder %s14, 0
      %p124 = por %p122, %p123
      %p125 = scmp.ne.s32.totalorder %s114, %s117
      %p126 = scmp.eq.s32.totalorder %s19, 1
      %p127 = por %p125, %p126
      %p128 = scmp.ne.s32.totalorder %s117, %s118
      %p129 = scmp.eq.s32.totalorder %s19, 0
      %p130 = por %p128, %p129
      %p131 = scmp.ne.s32.totalorder %s117, %s118
      %p132 = scmp.eq.s32.totalorder %s20, 1
      %p133 = por %p131, %p132
      %p135 = scmp.ne.s32.totalorder %s118, %s134
      %p136 = scmp.eq.s32.totalorder %s20, 0
      %p137 = por %p135, %p136
      %s138 = ssub.s32 %s22, %s29
      %p139 = scmp.eq.s32.totalorder %s138, 0
      %s141 = sadd.s32 %s140, 1
      %s142 = scalar_select %p139, %s140, %s141
      %p145 = pneg %p139
      %p146 = scmp.eq.s32.totalorder %s14, 1
      %p147 = por %p145, %p146
      %p148 = scmp.ne.s32.totalorder %s140, %s143
      %p149 = scmp.eq.s32.totalorder %s14, 0
      %p150 = por %p148, %p149
      %p151 = scmp.ne.s32.totalorder %s140, %s143
      %p152 = scmp.eq.s32.totalorder %s19, 1
      %p153 = por %p151, %p152
      %p154 = scmp.ne.s32.totalorder %s143, %s144
      %p155 = scmp.eq.s32.totalorder %s19, 0
      %p156 = por %p154, %p155
      %p157 = scmp.ne.s32.totalorder %s143, %s144
      %p158 = scmp.eq.s32.totalorder %s20, 1
      %p159 = por %p157, %p158
      %p161 = scmp.ne.s32.totalorder %s144, %s160
      %p162 = scmp.eq.s32.totalorder %s20, 0
      %p163 = por %p161, %p162
      %s164 = ssub.s32 %s21, %s33
      %s165 = ssub.s32 %s22, %s29
      %s166 = sor.u32 %s164, %s165
      %p167 = scmp.eq.s32.totalorder %s166, 0
      %s169 = sadd.s32 %s168, 1
      %s170 = scalar_select %p167, %s168, %s169
      %p173 = pneg %p167
      %p174 = scmp.eq.s32.totalorder %s14, 1
      %p175 = por %p173, %p174
      %p176 = scmp.ne.s32.totalorder %s168, %s171
      %p177 = scmp.eq.s32.totalorder %s14, 0
      %p178 = por %p176, %p177
      %p179 = scmp.ne.s32.totalorder %s168, %s171
      %p180 = scmp.eq.s32.totalorder %s19, 1
      %p181 = por %p179, %p180
      %p182 = scmp.ne.s32.totalorder %s171, %s172
      %p183 = scmp.eq.s32.totalorder %s19, 0
      %p184 = por %p182, %p183
      %p185 = scmp.ne.s32.totalorder %s171, %s172
      %p186 = scmp.eq.s32.totalorder %s20, 1
      %p187 = por %p185, %p186
      %p189 = scmp.ne.s32.totalorder %s172, %s188
      %p190 = scmp.eq.s32.totalorder %s20, 0
      %p191 = por %p189, %p190
      %p192 = scmp.le.s32.totalorder 1, %s14
      %p193 = scmp.lt.s32.totalorder %s14, 3
      %p194 = pnand %p192, %p193
      %p195 = pneg %p194
      // Predicated region
      $region9: #{tpu_custom_call.1} parent=5 // pred_check
        _
      $region10: #{tpu_custom_call.1} parent=5 // pred_check_branch
        %197 = sbr.rel (%p194) target = $region12
      $region11: #{tpu_custom_call.1} parent=5 // pred_region
        %s198 = ssub.s32 %s14, 1
        // Predicated region
        $region13: #{tpu_custom_call.1} parent=11 // pred_check
          %p199 = pneg %p104
        $region14: #{tpu_custom_call.1} parent=11 // pred_check_branch
          %201 = sbr.rel (%p199) target = $region16
        $region15: #{tpu_custom_call.1} parent=11 // pred_region
          %p202 = scmp.lt.s32.totalorder %s24, 0
          %s203 = scalar_select %p202, %s24, 0
          %s204 = smul.addr %s203, 4
          %s205 = scalar_lea.vmem %s2, %s204
        $region16: #{tpu_custom_call.1} parent=11 // pred_fallthru
          _
        // Predicated region
        $region17: #{tpu_custom_call.1} parent=11 // pred_check
          %p206 = pneg %p130
        $region18: #{tpu_custom_call.1} parent=11 // pred_check_branch
          %208 = sbr.rel (%p206) target = $region20
        $region19: #{tpu_custom_call.1} parent=11 // pred_region
          %p209 = scmp.lt.s32.totalorder %s24, 0
          %s210 = scalar_select %p209, %s24, 0
          %s211 = smul.addr %s210, 4
          %s212 = scalar_lea.vmem %s3, %s211
        $region20: #{tpu_custom_call.1} parent=11 // pred_fallthru
          _
        // Predicated region
        $region21: #{tpu_custom_call.1} parent=11 // pred_check
          %p213 = pneg %p156
        $region22: #{tpu_custom_call.1} parent=11 // pred_check_branch
          %215 = sbr.rel (%p213) target = $region24
        $region23: #{tpu_custom_call.1} parent=11 // pred_region
          %p216 = scmp.lt.s32.totalorder %s24, 0
          %s217 = scalar_select %p216, %s24, 0
          %s218 = smul.addr %s217, 4
          %s219 = scalar_lea.vmem %s4, %s218
        $region24: #{tpu_custom_call.1} parent=11 // pred_fallthru
          _
      $region12: #{tpu_custom_call.1} parent=5 // pred_fallthru
        _
      %p220 = scmp.lt.s32.totalorder %s14, 2
      // Predicated region
      $region25: #{tpu_custom_call.1} parent=5 // pred_check
        %p221 = pneg %p220
      $region26: #{tpu_custom_call.1} parent=5 // pred_check_branch
        %223 = sbr.rel (%p221) target = $region28
      $region27: #{tpu_custom_call.1} parent=5 // pred_region
        // Predicated region
        $region29: #{tpu_custom_call.1} parent=27 // pred_check
          %p224 = pneg %p46
        $region30: #{tpu_custom_call.1} parent=27 // pred_check_branch
          %226 = sbr.rel (%p224) target = $region32
        $region31: #{tpu_custom_call.1} parent=27 // pred_region
          %p227 = scmp.lt.s32.totalorder %s21, 1
          %s228 = scalar_select %p227, %s21, 1
          %s229 = smul.addr %s228, 4
          %s230 = smul.addr %s229, 8
          %s231 = scalar_lea.vmem %s0, %s230
        $region32: #{tpu_custom_call.1} parent=27 // pred_fallthru
          _
        // Predicated region
        $region33: #{tpu_custom_call.1} parent=27 // pred_check
          %p232 = pneg %p72
        $region34: #{tpu_custom_call.1} parent=27 // pred_check_branch
          %234 = sbr.rel (%p232) target = $region36
        $region35: #{tpu_custom_call.1} parent=27 // pred_region
          %p235 = scmp.lt.s32.totalorder %s21, 1
          %s236 = scalar_select %p235, %s21, 1
          %s237 = smul.addr %s236, 4
          %s238 = smul.addr %s237, 8
          %s239 = scalar_lea.vmem %s1, %s238
        $region36: #{tpu_custom_call.1} parent=27 // pred_fallthru
          _
      $region28: #{tpu_custom_call.1} parent=5 // pred_fallthru
        _
      %p240 = scmp.le.s32.totalorder 1, %s14
      %p241 = scmp.lt.s32.totalorder %s14, 3
      %p242 = pnand %p240, %p241
      %p243 = pneg %p242
      // Predicated region
      $region37: #{tpu_custom_call.1} parent=5 // pred_check
        _
      $region38: #{tpu_custom_call.1} parent=5 // pred_check_branch
        %245 = sbr.rel (%p242) target = $region40
      $region39: #{tpu_custom_call.1} parent=5 // pred_region
        %s246 = ssub.s32 %s14, 1
        %p247 = scmp.lt.s32.totalorder %s23, 1
        %s248 = scalar_select %p247, %s23, 1
        %s249 = smul.addr %s248, 4
        %s250 = smul.addr %s249, 8
        %s251 = scalar_lea.vmem %s0, %s250
        %p252 = pneg %p52
        %p253 = pneg %p49
        %p254 = scmp.lt.s32.totalorder %s23, 1
        %s255 = scalar_select %p254, %s23, 1
        %s256 = smul.addr %s255, 4
        %s257 = smul.addr %s256, 8
        %s258 = scalar_lea.vmem %s1, %s257
        %p259 = pneg %p78
        %p260 = pneg %p75
        %p261 = scmp.lt.s32.totalorder %s24, 0
        %s262 = scalar_select %p261, %s24, 0
        %s263 = smul.addr %s262, 4
        %s264 = scalar_lea.vmem %s2, %s263
        %p265 = pneg %p104
        %p266 = pneg %p101
        %p267 = scmp.lt.s32.totalorder %s24, 0
        %s268 = scalar_select %p267, %s24, 0
        %s269 = smul.addr %s268, 4
        %s270 = scalar_lea.vmem %s3, %s269
        %p271 = pneg %p130
        %p272 = pneg %p127
        %p273 = scmp.lt.s32.totalorder %s24, 0
        %s274 = scalar_select %p273, %s24, 0
        %s275 = smul.addr %s274, 4
        %s276 = scalar_lea.vmem %s4, %s275
        %p277 = pneg %p156
        %p278 = pneg %p153
        %p279 = pneg %p184
        %p280 = pneg %p181
        %s281 = sand.u32 %s171, 1
        %s282 = scalar_lea.sflag [#allocation3], %s281
        %s283 = sand.u32 %s171, 1
        %s284 = smul.addr %s283, 64
        %s285 = scalar_lea.vmem [#allocation2], %s284
        %p286 = scmp.lt.s32.totalorder %s23, 1
        %s287 = scalar_select %p286, %s23, 1
        %s288 = smul.addr %s287, 4
        %s289 = smul.addr %s288, 8
        %s290 = scalar_lea.vmem %s0, %s289
        %p291 = scmp.lt.s32.totalorder %s23, 1
        %s292 = scalar_select %p291, %s23, 1
        %s293 = smul.addr %s292, 4
        %s294 = smul.addr %s293, 8
        %s295 = scalar_lea.vmem %s1, %s294
        %p296 = scmp.lt.s32.totalorder %s24, 0
        %s297 = scalar_select %p296, %s24, 0
        %s298 = smul.addr %s297, 4
        %s299 = scalar_lea.vmem %s2, %s298
        %p300 = scmp.lt.s32.totalorder %s24, 0
        %s301 = scalar_select %p300, %s24, 0
        %s302 = smul.addr %s301, 4
        %s303 = scalar_lea.vmem %s3, %s302
        %p304 = scmp.lt.s32.totalorder %s24, 0
        %s305 = scalar_select %p304, %s24, 0
        %s306 = smul.addr %s305, 4
        %s307 = scalar_lea.vmem %s4, %s306
        %s308 = smul.u32 4, %s24
        %v309 = vld [vmem:[%s299] sm:$0xf]
        %v310 = vld [vmem:[%s290] sm:$0xff]
        %v311 = vld [vmem:[%s290 + $0x8] sm:$0xff]
        %v312 = vld [vmem:[%s290 + $0x10] sm:$0xff]
        %v313 = vld [vmem:[%s290 + $0x18] sm:$0xff]
        %v314 = vld [vmem:[%s303] sm:$0xf]
        %v315 = vld [vmem:[%s295] sm:$0xff]
        %v316 = vld [vmem:[%s295 + $0x8] sm:$0xff]
        %v317 = vld [vmem:[%s295 + $0x10] sm:$0xff]
        %v318 = vld [vmem:[%s295 + $0x18] sm:$0xff]
        %vm319 = vcmask 261120
        %v321 = vsel %vm319, %v314, 0
        %323 = vmatprep.subr.mxu0 0.0
        %324 = vmatpush1.msra.mxu0 0.0
        %325 = vmatprep.subr.mxu0 0.0
        %326 = vmatpush1.msra.mxu0 0.0
        %327 = vmatprep.subr.mxu0 0.0
        %328 = vmatpush1.msra.mxu0 0.0
        %329 = vmatprep.subr.mxu0 0.0
        %330 = vmatpush1.msra.mxu0 0.0
        %331 = vmatprep.subr.mxu0 0.0
        %332 = vmatpush1.msra.mxu0 0.0
        %333 = vmatprep.subr.mxu0 0.0
        %334 = vmatpush1.msra.mxu0 0.0
        %335 = vmatprep.subr.mxu0 0.0
        %336 = vmatpush1.msra.mxu0 0.0
        %337 = vmatprep.subr.mxu0 0.0
        %338 = vmatpush1.msra.mxu0 0.0
        %339 = vmatprep.subr.mxu0 0.0
        %340 = vmatpush1.msra.mxu0 0.0
        %341 = vmatprep.subr.mxu0 0.0
        %342 = vmatpush1.msra.mxu0 0.0
        %343 = vmatprep.subr.mxu0 0.0
        %344 = vmatpush1.msra.mxu0 0.0
        %345 = vmatprep.subr.mxu0 0.0
        %346 = vmatpush1.msra.mxu0 0.0
        %347 = vmatprep.subr.mxu0 0.0
        %348 = vmatpush1.msra.mxu0 %v318
        %349 = vmatprep.subr.mxu0 0.0
        %350 = vmatpush1.msra.mxu0 %v317
        %351 = vmatprep.subr.mxu0 0.0
        %352 = vmatpush1.msra.mxu0 %v316
        %353 = vmatprep.subr.mxu0 0.0
        %354 = vmatpush1.msra.mxu0 %v315
        %355 = vmatprep.subr.mxu0 0.0
        %356 = vmatpush2.msra.mxu0 0.0
        %357 = vmatprep.subr.mxu0 0.0
        %358 = vmatpush2.msra.mxu0 0.0
        %359 = vmatprep.subr.mxu0 0.0
        %360 = vmatpush2.msra.mxu0 0.0
        %361 = vmatprep.subr.mxu0 0.0
        %362 = vmatpush2.msra.mxu0 0.0
        %363 = vmatprep.subr.mxu0 0.0
        %364 = vmatpush2.msra.mxu0 0.0
        %365 = vmatprep.subr.mxu0 0.0
        %366 = vmatpush2.msra.mxu0 0.0
        %367 = vmatprep.subr.mxu0 0.0
        %368 = vmatpush2.msra.mxu0 0.0
        %369 = vmatprep.subr.mxu0 0.0
        %370 = vmatpush2.msra.mxu0 0.0
        %371 = vmatprep.subr.mxu0 0.0
        %372 = vmatpush2.msra.mxu0 0.0
        %373 = vmatprep.subr.mxu0 0.0
        %374 = vmatpush2.msra.mxu0 0.0
        %375 = vmatprep.subr.mxu0 0.0
        %376 = vmatpush2.msra.mxu0 0.0
        %377 = vmatprep.subr.mxu0 0.0
        %378 = vmatpush2.msra.mxu0 0.0
        %379 = vmatprep.subr.mxu0 0.0
        %380 = vmatpush2.msra.mxu0 0.0
        %381 = vmatprep.subr.mxu0 0.0
        %382 = vmatpush2.msra.mxu0 0.0
        %383 = vmatprep.subr.mxu0 0.0
        %384 = vmatpush2.msra.mxu0 0.0
        %385 = vmatprep.subr.mxu0 0.0
        %386 = vmatpush2.msra.mxu0 0.0
        %387 = vmatprep.mubr.f32.mxu0 0.0
        %388 = vmatmul.mubr.f32.gmra.mxu0 %v321
        %v389 = vpop.f32.mrf.mxu0
        %v390 = vadd.f32 0.0, %v389
        %v391 = vpop.f32.mrf.mxu0
        %392 = vdwg.mxu0
        %v393 = vld [vmem:[%s307] sm:$0xf]
        %395 = vset.pattern.permute.xlu0 0
        %396 = vperm.xlu0 %395, %v393
        %v397 = vpop.permute.xlu0 %396
        %v400 = vsel %vm319, %v309, 0
        %402 = vmatprep.subr.mxu0 0.0
        %403 = vmatpush1.msra.mxu0 0.0
        %404 = vmatprep.subr.mxu0 0.0
        %405 = vmatpush1.msra.mxu0 0.0
        %406 = vmatprep.subr.mxu0 0.0
        %407 = vmatpush1.msra.mxu0 0.0
        %408 = vmatprep.subr.mxu0 0.0
        %409 = vmatpush1.msra.mxu0 0.0
        %410 = vmatprep.subr.mxu0 0.0
        %411 = vmatpush1.msra.mxu0 0.0
        %412 = vmatprep.subr.mxu0 0.0
        %413 = vmatpush1.msra.mxu0 0.0
        %414 = vmatprep.subr.mxu0 0.0
        %415 = vmatpush1.msra.mxu0 0.0
        %416 = vmatprep.subr.mxu0 0.0
        %417 = vmatpush1.msra.mxu0 0.0
        %418 = vmatprep.subr.mxu0 0.0
        %419 = vmatpush1.msra.mxu0 0.0
        %420 = vmatprep.subr.mxu0 0.0
        %421 = vmatpush1.msra.mxu0 0.0
        %422 = vmatprep.subr.mxu0 0.0
        %423 = vmatpush1.msra.mxu0 0.0
        %424 = vmatprep.subr.mxu0 0.0
        %425 = vmatpush1.msra.mxu0 0.0
        %426 = vmatprep.subr.mxu0 0.0
        %427 = vmatpush1.msra.mxu0 %v313
        %428 = vmatprep.subr.mxu0 0.0
        %429 = vmatpush1.msra.mxu0 %v312
        %430 = vmatprep.subr.mxu0 0.0
        %431 = vmatpush1.msra.mxu0 %v311
        %432 = vmatprep.subr.mxu0 0.0
        %433 = vmatpush1.msra.mxu0 %v310
        %434 = vmatprep.subr.mxu0 0.0
        %435 = vmatpush2.msra.mxu0 0.0
        %436 = vmatprep.subr.mxu0 0.0
        %437 = vmatpush2.msra.mxu0 0.0
        %438 = vmatprep.subr.mxu0 0.0
        %439 = vmatpush2.msra.mxu0 0.0
        %440 = vmatprep.subr.mxu0 0.0
        %441 = vmatpush2.msra.mxu0 0.0
        %442 = vmatprep.subr.mxu0 0.0
        %443 = vmatpush2.msra.mxu0 0.0
        %444 = vmatprep.subr.mxu0 0.0
        %445 = vmatpush2.msra.mxu0 0.0
        %446 = vmatprep.subr.mxu0 0.0
        %447 = vmatpush2.msra.mxu0 0.0
        %448 = vmatprep.subr.mxu0 0.0
        %449 = vmatpush2.msra.mxu0 0.0
        %450 = vmatprep.subr.mxu0 0.0
        %451 = vmatpush2.msra.mxu0 0.0
        %452 = vmatprep.subr.mxu0 0.0
        %453 = vmatpush2.msra.mxu0 0.0
        %454 = vmatprep.subr.mxu0 0.0
        %455 = vmatpush2.msra.mxu0 0.0
        %456 = vmatprep.subr.mxu0 0.0
        %457 = vmatpush2.msra.mxu0 0.0
        %458 = vmatprep.subr.mxu0 0.0
        %459 = vmatpush2.msra.mxu0 0.0
        %460 = vmatprep.subr.mxu0 0.0
        %461 = vmatpush2.msra.mxu0 0.0
        %462 = vmatprep.subr.mxu0 0.0
        %463 = vmatpush2.msra.mxu0 0.0
        %464 = vmatprep.subr.mxu0 0.0
        %465 = vmatpush2.msra.mxu0 0.0
        %466 = vmatprep.mubr.f32.mxu0 0.0
        %467 = vmatmul.mubr.f32.gmra.mxu0 %v400
        %v468 = vpop.f32.mrf.mxu0
        %v469 = vadd.f32 %v397, %v468
        %v470 = vpop.f32.mrf.mxu0
        %471 = vdwg.mxu0
        %v474 = vunpack.c.l.s4 1966171168
        %v475 = vunpack.c.0.s8 %v474
        %v476 = vlaneseq
        %v477 = vshrl.u32 %v476, 7
        %v478 = vsub.s32 %v475, %v477
        %v479 = vrot.slane %v469, %v478
        %v480 = vcombine.high %v479, %v479
        %v482 = vunpack.c.l.s4 1966171168
        %v483 = vunpack.c.0.s8 %v482
        %v484 = vlaneseq
        %v485 = vshrl.u32 %v484, 7
        %v486 = vsub.s32 %v483, %v485
        %v487 = vrot.slane %v479, %v486
        %v489 = vunpack.c.l.s4 1966171168
        %v490 = vunpack.c.0.s8 %v489
        %v491 = vlaneseq
        %v492 = vshrl.u32 %v491, 7
        %v493 = vsub.s32 %v490, %v492
        %v494 = vrot.slane %v480, %v493
        %v495 = vcombine.high %v487, %v487
        %v496 = vcombine.high %v494, %v494
        %v497 = vlaneseq
        %v498 = vshrl.u32 %v497, 7
        %v499 = vsub.s32 0, %v498
        %v500 = vrot.slane %v390, %v499
        %502 = vbcast.lane.b32.xlu0 %v500, 256
        %v503 = vpop.permute.xlu0 %502
        %s505 = sor.u32 256, 8
        %506 = vbcast.lane.b32.xlu0 %v500, %s505
        %v507 = vpop.permute.xlu0 %506
        %v508 = vlaneseq
        %v509 = vshrl.u32 %v508, 7
        %v510 = vsub.s32 1, %v509
        %v511 = vrot.slane %v390, %v510
        %513 = vbcast.lane.b32.xlu0 %v511, 256
        %v514 = vpop.permute.xlu0 %513
        %s516 = sor.u32 256, 8
        %517 = vbcast.lane.b32.xlu0 %v511, %s516
        %v518 = vpop.permute.xlu0 %517
        %v519 = vlaneseq
        %v520 = vshrl.u32 %v519, 7
        %v521 = vsub.s32 2, %v520
        %v522 = vrot.slane %v390, %v521
        %524 = vbcast.lane.b32.xlu0 %v522, 256
        %v525 = vpop.permute.xlu0 %524
        %s527 = sor.u32 256, 8
        %528 = vbcast.lane.b32.xlu0 %v522, %s527
        %v529 = vpop.permute.xlu0 %528
        %v530 = vlaneseq
        %v531 = vshrl.u32 %v530, 7
        %v532 = vsub.s32 3, %v531
        %v533 = vrot.slane %v390, %v532
        %535 = vbcast.lane.b32.xlu0 %v533, 256
        %v536 = vpop.permute.xlu0 %535
        %s538 = sor.u32 256, 8
        %539 = vbcast.lane.b32.xlu0 %v533, %s538
        %v540 = vpop.permute.xlu0 %539
        %v541 = vlaneseq
        %v542 = vshrl.u32 %v541, 7
        %v543 = vsub.s32 0, %v542
        %v544 = vrot.slane %v487, %v543
        %v545 = vlaneseq
        %v546 = vshrl.u32 %v545, 7
        %v547 = vsub.s32 0, %v546
        %v548 = vrot.slane %v494, %v547
        %v549 = vlaneseq
        %v550 = vshrl.u32 %v549, 7
        %v551 = vsub.s32 0, %v550
        %v552 = vrot.slane %v495, %v551
        %v553 = vlaneseq
        %v554 = vshrl.u32 %v553, 7
        %v555 = vsub.s32 0, %v554
        %v556 = vrot.slane %v496, %v555
        %v561 = vadd.f32 %v544, %v503
        %v562 = vadd.f32 %v544, %v507
        %v563 = vadd.f32 %v548, %v514
        %v564 = vadd.f32 %v548, %v518
        %v565 = vadd.f32 %v552, %v525
        %v566 = vadd.f32 %v552, %v529
        %v567 = vadd.f32 %v556, %v536
        %v568 = vadd.f32 %v556, %v540
        %vm569 = vcmask 130048
        %570 = vst.msk [vmem:[%s285] sm:$0xff] %vm569, %v561
        %571 = vst.msk [vmem:[%s285 + $0x8] sm:$0xff] %vm569, %v562
        %572 = vst.msk [vmem:[%s285 + $0x10] sm:$0xff] %vm569, %v563
        %573 = vst.msk [vmem:[%s285 + $0x18] sm:$0xff] %vm569, %v564
        %574 = vst.msk [vmem:[%s285 + $0x20] sm:$0xff] %vm569, %v565
        %575 = vst.msk [vmem:[%s285 + $0x28] sm:$0xff] %vm569, %v566
        %576 = vst.msk [vmem:[%s285 + $0x30] sm:$0xff] %vm569, %v567
        %577 = vst.msk [vmem:[%s285 + $0x38] sm:$0xff] %vm569, %v568
        %s578 = sand.u32 %s171, 1
        %s579 = scalar_lea.sflag [#allocation3], %s578
        %s580 = sand.u32 %s171, 1
        %s581 = smul.addr %s580, 64
        %s582 = scalar_lea.vmem [#allocation2], %s581
        // Predicated region
        $region41: #{tpu_custom_call.1} parent=39 // pred_check
          %p583 = pneg %p181
        $region42: #{tpu_custom_call.1} parent=39 // pred_check_branch
          %585 = sbr.rel (%p583) target = $region44
        $region43: #{tpu_custom_call.1} parent=39 // pred_region
          %s586 = smul.u32 4, %s24
          %s588 = ssub.s32 1024, 1024
          %589 = vsyncadd %s579, %s588
          %s590 = smul.addr %s586, 2
          %s591 = smul.addr %s23, 8
          %s592 = sadd.s32 %s590, %s591
          %s593 = smul.addr %s592, 128
          %s594 = scalar_lea.hbm %s5, %s593
          %s595 = sshll.u32 %s582, 4
          %s596 = int_to_ptr.vmem [resolvable:$true] %s595
          %601 = dma.vmem_to_hbm [thread:$0]  %s596, 1024, %s594, %s579, 128, 128, 8
        $region44: #{tpu_custom_call.1} parent=39 // pred_fallthru
          _
      $region40: #{tpu_custom_call.1} parent=5 // pred_fallthru
        _
      %p602 = scmp.le.s32.totalorder 2, %s14
      // Predicated region
      $region45: #{tpu_custom_call.1} parent=5 // pred_check
        %p603 = pneg %p602
      $region46: #{tpu_custom_call.1} parent=5 // pred_check_branch
        %605 = sbr.rel (%p603) target = $region48
      $region47: #{tpu_custom_call.1} parent=5 // pred_region
        %s606 = ssub.s32 %s14, 2
        // Predicated region
        $region49: #{tpu_custom_call.1} parent=47 // pred_check
          %p607 = pneg %p187
        $region50: #{tpu_custom_call.1} parent=47 // pred_check_branch
          %609 = sbr.rel (%p607) target = $region52
        $region51: #{tpu_custom_call.1} parent=47 // pred_region
          %s610 = sand.u32 %s172, 1
          %s611 = scalar_lea.sflag [#allocation3], %s610
          %s612 = sand.u32 %s172, 1
          %s613 = smul.addr %s612, 64
          %s614 = scalar_lea.vmem [#allocation2], %s613
          %615 = dma.done %s611, 1024
        $region52: #{tpu_custom_call.1} parent=47 // pred_fallthru
          _
      $region48: #{tpu_custom_call.1} parent=5 // pred_fallthru
        _
    $region6: #{tpu_custom_call.1} parent=1 // loop_footer
      %s18 = sadd.s32 1, %s14
    $region7: #{tpu_custom_call.1} parent=1 // loop_footer_branch
      %13 = sbr.rel target = $region3
    $region8: #{tpu_custom_call.1} parent=1 // loop_exit
      _
    %616 = vsyncpa [#allocation3], 1
    %s617 = scalar_lea.sflag [#allocation3], 1
    %618 = vsyncpa %s617, 1

</llo_original>
